<compile_context>
chip_gen: v6e
topology: v6e:2x2x1
jax: 0.10.0
libtpu: 0.0.40
codegen_flags: <defaults>
</compile_context>

<pallas_src>
import functools

import jax
import jax.numpy as jnp
from jax.experimental import pallas as pl
from jax.experimental.pallas import tpu as pltpu

EPS = 1e-5  # nn.BatchNorm2d default


def _round_up(v, m):
    return (v + m - 1) // m * m


def _matmul_stats_kernel(x_ref, w_ref, y_ref, stats_ref):
    """Pass 1: one M-tile of y = x @ W, plus per-channel sum / sumsq accumulation.

    x_ref:     (TM, Cin_p)       flattened strided-input tile
    w_ref:     (Cin_p, Cout_p)   resident 1x1-conv weight
    y_ref:     (TM, Cout_p)      raw conv output tile (written to HBM)
    stats_ref: (8, Cout_p)       resident accumulator; row 0 = sum, row 1 = sumsq
    """
    @pl.when(pl.program_id(0) == 0)
    def _init():
        stats_ref[...] = jnp.zeros_like(stats_ref)

    y = jnp.dot(x_ref[...], w_ref[...], preferred_element_type=jnp.float32)  # MXU
    y_ref[...] = y.astype(y_ref.dtype)
    # Cross-tile BN statistics ride in the VPU/XLU slots under the MXU work.
    stats_ref[0:1, :] += jnp.sum(y, axis=0, keepdims=True)
    stats_ref[1:2, :] += jnp.sum(y * y, axis=0, keepdims=True)


def _bn_apply_kernel(y_ref, stats_ref, gamma_ref, beta_ref, o_ref, *, inv_m):
    """Pass 2: element-wise BatchNorm with the global batch statistics."""
    mean = stats_ref[0:1, :] * inv_m
    var = stats_ref[1:2, :] * inv_m - mean * mean        # biased variance (f32)
    inv_std = jax.lax.rsqrt(var + EPS)                   # EUP — effectively free
    scale = gamma_ref[...] * inv_std
    shift = beta_ref[...] - mean * scale
    o_ref[...] = (y_ref[...] * scale + shift).astype(o_ref.dtype)


def shortcut_forward(x, conv_w, bn_gamma, bn_beta, stride, *, tm=512):
    """x: (N, Cin, H, W) NCHW.  conv_w: (Cout, Cin, 1, 1).  Returns NCHW."""
    N, Cin, H, W = x.shape
    Cout = conv_w.shape[0]

    # ---- host-side layout glue (NCHW module contract) ----------------------
    xs = x[:, :, ::stride, ::stride]                       # (N, Cin, Ho, Wo)
    Ho, Wo = xs.shape[2], xs.shape[3]
    M = N * Ho * Wo
    x_flat = jnp.transpose(xs, (0, 2, 3, 1)).reshape(M, Cin)   # channels-last

    # Lane-dense padding (channels -> multiple of 128); zero padding is inert.
    cin_p = _round_up(Cin, 128)
    cout_p = _round_up(Cout, 128)
    tm = min(tm, _round_up(M, 8))          # M-tile: <=512 rows, sublane-aligned
    m_p = _round_up(M, tm)
    n_tiles = m_p // tm

    x_p = jnp.zeros((m_p, cin_p), x.dtype).at[:M, :Cin].set(x_flat)
    w_p = jnp.zeros((cin_p, cout_p), conv_w.dtype).at[:Cin, :Cout].set(
        conv_w.reshape(Cout, Cin).T)
    gamma_p = jnp.zeros((1, cout_p), jnp.float32).at[0, :Cout].set(
        bn_gamma.astype(jnp.float32))
    beta_p = jnp.zeros((1, cout_p), jnp.float32).at[0, :Cout].set(
        bn_beta.astype(jnp.float32))

    # Explicit VMEM budget (v5e/v6e: 128 MiB phys, v7x: 64 MiB phys).
    try:
        vmem_cap = int(pltpu.get_tpu_info().vmem_capacity_bytes)
    except Exception:
        vmem_cap = 64 * 1024 * 1024
    vmem_limit = int(min(64 << 20, (vmem_cap * 3) // 4))

    # ---- pass 1: tiled matmul + cross-tile sum/sumsq reduction --------------
    y_raw, stats = pl.pallas_call(
        _matmul_stats_kernel,
        out_shape=(
            jax.ShapeDtypeStruct((m_p, cout_p), jnp.float32),
            jax.ShapeDtypeStruct((8, cout_p), jnp.float32),
        ),
        grid=(n_tiles,),
        in_specs=[
            pl.BlockSpec((tm, cin_p), lambda i: (i, 0)),
            pl.BlockSpec((cin_p, cout_p), lambda i: (0, 0)),     # resident weight
        ],
        out_specs=(
            pl.BlockSpec((tm, cout_p), lambda i: (i, 0)),
            pl.BlockSpec((8, cout_p), lambda i: (0, 0)),         # resident stats
        ),
        compiler_params=pltpu.CompilerParams(
            dimension_semantics=("arbitrary",),   # stats accumulator carries
            vmem_limit_bytes=vmem_limit),
    )(x_p, w_p)

    # ---- pass 2: element-wise normalize (in place via aliasing) -------------
    out_flat = pl.pallas_call(
        functools.partial(_bn_apply_kernel, inv_m=1.0 / M),
        out_shape=jax.ShapeDtypeStruct((m_p, cout_p), jnp.float32),
        grid=(n_tiles,),
        in_specs=[
            pl.BlockSpec((tm, cout_p), lambda i: (i, 0)),
            pl.BlockSpec((8, cout_p), lambda i: (0, 0)),
            pl.BlockSpec((1, cout_p), lambda i: (0, 0)),
            pl.BlockSpec((1, cout_p), lambda i: (0, 0)),
        ],
        out_specs=pl.BlockSpec((tm, cout_p), lambda i: (i, 0)),
        input_output_aliases={0: 0},              # normalize y in place
        compiler_params=pltpu.CompilerParams(
            dimension_semantics=("parallel",),    # element-wise: megacore-shard
            vmem_limit_bytes=vmem_limit),
    )(y_raw, stats, gamma_p, beta_p)

    out = out_flat[:M, :Cout].astype(x.dtype)
    return jnp.transpose(out.reshape(N, Ho, Wo, Cout), (0, 3, 1, 2))


def _reference(x, conv_w, bn_gamma, bn_beta, stride):
    y = jax.lax.conv_general_dilated(
        x, conv_w, window_strides=(stride, stride), padding="VALID",
        dimension_numbers=("NCHW", "OIHW", "NCHW"))
    mean = jnp.mean(y, axis=(0, 2, 3), keepdims=True)
    var = jnp.mean((y - mean) ** 2, axis=(0, 2, 3), keepdims=True)
    g = bn_gamma.reshape(1, -1, 1, 1)
    b = bn_beta.reshape(1, -1, 1, 1)
    return (y - mean) / jnp.sqrt(var + EPS) * g + b


if __name__ == "__main__":
    key = jax.random.PRNGKey(0)
    N, Cin, H, W = 2, 4, 16, 16
    Cout, stride = 8, 2

    k_x, k_w = jax.random.split(key)
    x = jax.random.normal(k_x, (N, Cin, H, W), dtype=jnp.float32)
    conv_w = jax.random.normal(k_w, (Cout, Cin, 1, 1), dtype=jnp.float32) * (1.0 / Cin) ** 0.5
    bn_gamma = jnp.linspace(0.5, 1.5, Cout, dtype=jnp.float32)
    bn_beta = jnp.linspace(-0.25, 0.25, Cout, dtype=jnp.float32)

    fwd = jax.jit(functools.partial(shortcut_forward, stride=stride))
    out = jax.block_until_ready(fwd(x, conv_w, bn_gamma, bn_beta))

    ref = _reference(x, conv_w, bn_gamma, bn_beta, stride)
    assert out.shape == (N, Cout, H // stride, W // stride)
    assert jnp.allclose(out, ref, atol=1e-4, rtol=1e-4)
    print("KERNEL_OK")
</pallas_src>

<mosaic_0001>
module attributes {stable_mosaic.version = 11 : i64} {
  func.func @_matmul_stats_kernel(%arg0: i32, %arg1: memref<128x128xf32, #tpu.memory_space<vmem>>, %arg2: memref<128x128xf32, #tpu.memory_space<vmem>>, %arg3: memref<128x128xf32, #tpu.memory_space<vmem>>, %arg4: memref<8x128xf32, #tpu.memory_space<vmem>>) attributes {dimension_semantics = [#tpu.dimension_semantics<arbitrary>], iteration_bounds = array<i64: 1>, scalar_prefetch = 0 : i64, scratch_operands = 0 : i64, tpu.core_type = #tpu.core_type<tc>, window_params = [{transform_indices = @transform_0, window_bounds = array<i64: 128, 128>}, {pipeline_mode = #tpu.pipeline_mode<synchronous>, transform_indices = @transform_1, window_bounds = array<i64: 128, 128>}, {transform_indices = @transform_2, window_bounds = array<i64: 128, 128>}, {pipeline_mode = #tpu.pipeline_mode<synchronous>, transform_indices = @transform_3, window_bounds = array<i64: 8, 128>}]} {
    %c0_i32 = arith.constant 0 : i32
    %0 = arith.cmpi eq, %arg0, %c0_i32 : i32
    %1 = arith.extui %0 : i1 to i32
    %c0_i32_0 = arith.constant 0 : i32
    %2 = arith.cmpi ne, %1, %c0_i32_0 : i32
    scf.if %2 {
      %cst_15 = arith.constant 0.000000e+00 : f32
      %18 = vector.broadcast %cst_15 : f32 to vector<8x128xf32>
      %c0_16 = arith.constant 0 : index
      %c0_17 = arith.constant 0 : index
      %19 = vector.load %arg4[%c0_16, %c0_17] : memref<8x128xf32, #tpu.memory_space<vmem>>, vector<8x128xf32>
      tpu.vector_store %arg4[%c0_16, %c0_17], %18 {strides = array<i32>} : memref<8x128xf32, #tpu.memory_space<vmem>>, vector<8x128xf32>,
    } else {
    }
    %c0 = arith.constant 0 : index
    %c0_1 = arith.constant 0 : index
    %3 = vector.load %arg1[%c0, %c0_1] : memref<128x128xf32, #tpu.memory_space<vmem>>, vector<128x128xf32>
    %c0_2 = arith.constant 0 : index
    %c0_3 = arith.constant 0 : index
    %4 = vector.load %arg2[%c0_2, %c0_3] : memref<128x128xf32, #tpu.memory_space<vmem>>, vector<128x128xf32>
    %cst = arith.constant dense<0.000000e+00> : vector<128x128xf32>
    %5 = tpu.matmul %3, %4, %cst {dimension_numbers = #tpu.dot_dimension_numbers<[1], [0], [0], [1], [0, 0, 1, 1], [], []>} : vector<128x128xf32>, vector<128x128xf32>, vector<128x128xf32> -> vector<128x128xf32>
    %c0_4 = arith.constant 0 : index
    %c0_5 = arith.constant 0 : index
    %6 = vector.load %arg3[%c0_4, %c0_5] : memref<128x128xf32, #tpu.memory_space<vmem>>, vector<128x128xf32>
    tpu.vector_store %arg3[%c0_4, %c0_5], %5 {strides = array<i32>} : memref<128x128xf32, #tpu.memory_space<vmem>>, vector<128x128xf32>,
    %c0_6 = arith.constant 0 : index
    %c0_7 = arith.constant 0 : index
    %7 = vector.load %arg4[%c0_6, %c0_7] : memref<8x128xf32, #tpu.memory_space<vmem>>, vector<1x128xf32>
    %cst_8 = arith.constant dense<0.000000e+00> : vector<128xf32>
    %8 = vector.multi_reduction <add>, %5, %cst_8 [0] : vector<128x128xf32> to vector<128xf32>
    %9 = vector.shape_cast %8 : vector<128xf32> to vector<1x128xf32>
    %10 = arith.addf %7, %9 : vector<1x128xf32>
    %c0_9 = arith.constant 0 : index
    %c0_10 = arith.constant 0 : index
    %11 = vector.load %arg4[%c0_9, %c0_10] : memref<8x128xf32, #tpu.memory_space<vmem>>, vector<1x128xf32>
    tpu.vector_store %arg4[%c0_9, %c0_10], %10 {strides = array<i32>} : memref<8x128xf32, #tpu.memory_space<vmem>>, vector<1x128xf32>,
    %c1 = arith.constant 1 : index
    %c0_11 = arith.constant 0 : index
    %12 = vector.load %arg4[%c1, %c0_11] : memref<8x128xf32, #tpu.memory_space<vmem>>, vector<1x128xf32>
    %13 = arith.mulf %5, %5 : vector<128x128xf32>
    %cst_12 = arith.constant dense<0.000000e+00> : vector<128xf32>
    %14 = vector.multi_reduction <add>, %13, %cst_12 [0] : vector<128x128xf32> to vector<128xf32>
    %15 = vector.shape_cast %14 : vector<128xf32> to vector<1x128xf32>
    %16 = arith.addf %12, %15 : vector<1x128xf32>
    %c1_13 = arith.constant 1 : index
    %c0_14 = arith.constant 0 : index
    %17 = vector.load %arg4[%c1_13, %c0_14] : memref<8x128xf32, #tpu.memory_space<vmem>>, vector<1x128xf32>
    tpu.vector_store %arg4[%c1_13, %c0_14], %16 {strides = array<i32>} : memref<8x128xf32, #tpu.memory_space<vmem>>, vector<1x128xf32>,
    return
  }
  func.func @transform_0(%arg0: i32) -> (i32, i32) {
    %c0_i32 = arith.constant 0 : i32
    %c0_i32_0 = arith.constant 0 : i32
    return %arg0, %c0_i32 : i32, i32
  }
  func.func @transform_1(%arg0: i32) -> (i32, i32) {
    %c0_i32 = arith.constant 0 : i32
    %c0_i32_0 = arith.constant 0 : i32
    %c0_i32_1 = arith.constant 0 : i32
    return %c0_i32, %c0_i32_0 : i32, i32
  }
  func.func @transform_2(%arg0: i32) -> (i32, i32) {
    %c0_i32 = arith.constant 0 : i32
    %c0_i32_0 = arith.constant 0 : i32
    return %arg0, %c0_i32 : i32, i32
  }
  func.func @transform_3(%arg0: i32) -> (i32, i32) {
    %c0_i32 = arith.constant 0 : i32
    %c0_i32_0 = arith.constant 0 : i32
    %c0_i32_1 = arith.constant 0 : i32
    return %c0_i32, %c0_i32_0 : i32, i32
  }
}

module attributes {stable_mosaic.version = 11 : i64} {
  func.func @_bn_apply_kernel(%arg0: i32, %arg1: memref<128x128xf32, #tpu.memory_space<vmem>>, %arg2: memref<8x128xf32, #tpu.memory_space<vmem>>, %arg3: memref<1x128xf32, #tpu.memory_space<vmem>>, %arg4: memref<1x128xf32, #tpu.memory_space<vmem>>, %arg5: memref<128x128xf32, #tpu.memory_space<vmem>>) attributes {dimension_semantics = [#tpu.dimension_semantics<parallel>], iteration_bounds = array<i64: 1>, scalar_prefetch = 0 : i64, scratch_operands = 0 : i64, tpu.core_type = #tpu.core_type<tc>, window_params = [{transform_indices = @transform_0, window_bounds = array<i64: 128, 128>}, {pipeline_mode = #tpu.pipeline_mode<synchronous>, transform_indices = @transform_1, window_bounds = array<i64: 8, 128>}, {pipeline_mode = #tpu.pipeline_mode<synchronous>, transform_indices = @transform_2, window_bounds = array<i64: 1, 128>}, {pipeline_mode = #tpu.pipeline_mode<synchronous>, transform_indices = @transform_3, window_bounds = array<i64: 1, 128>}, {transform_indices = @transform_4, window_bounds = array<i64: 128, 128>}]} {
    %c0 = arith.constant 0 : index
    %c0_0 = arith.constant 0 : index
    %0 = vector.load %arg2[%c0, %c0_0] : memref<8x128xf32, #tpu.memory_space<vmem>>, vector<1x128xf32>
    %cst = arith.constant 7.812500e-03 : f32
    %1 = vector.broadcast %cst : f32 to vector<1x128xf32>
    %2 = arith.mulf %0, %1 : vector<1x128xf32>
    %c1 = arith.constant 1 : index
    %c0_1 = arith.constant 0 : index
    %3 = vector.load %arg2[%c1, %c0_1] : memref<8x128xf32, #tpu.memory_space<vmem>>, vector<1x128xf32>
    %cst_2 = arith.constant 7.812500e-03 : f32
    %4 = vector.broadcast %cst_2 : f32 to vector<1x128xf32>
    %5 = arith.mulf %3, %4 : vector<1x128xf32>
    %6 = arith.mulf %2, %2 : vector<1x128xf32>
    %7 = arith.subf %5, %6 : vector<1x128xf32>
    %cst_3 = arith.constant 9.99999974E-6 : f32
    %8 = vector.broadcast %cst_3 : f32 to vector<1x128xf32>
    %9 = arith.addf %7, %8 : vector<1x128xf32>
    %10 = math.rsqrt %9 : vector<1x128xf32>
    %c0_4 = arith.constant 0 : index
    %c0_5 = arith.constant 0 : index
    %11 = vector.load %arg3[%c0_4, %c0_5] : memref<1x128xf32, #tpu.memory_space<vmem>>, vector<1x128xf32>
    %12 = arith.mulf %11, %10 : vector<1x128xf32>
    %c0_6 = arith.constant 0 : index
    %c0_7 = arith.constant 0 : index
    %13 = vector.load %arg4[%c0_6, %c0_7] : memref<1x128xf32, #tpu.memory_space<vmem>>, vector<1x128xf32>
    %14 = arith.mulf %2, %12 : vector<1x128xf32>
    %15 = arith.subf %13, %14 : vector<1x128xf32>
    %c0_8 = arith.constant 0 : index
    %c0_9 = arith.constant 0 : index
    %16 = vector.load %arg1[%c0_8, %c0_9] : memref<128x128xf32, #tpu.memory_space<vmem>>, vector<128x128xf32>
    %17 = vector.broadcast %12 : vector<1x128xf32> to vector<128x128xf32>
    %18 = arith.mulf %16, %17 : vector<128x128xf32>
    %19 = vector.broadcast %15 : vector<1x128xf32> to vector<128x128xf32>
    %20 = arith.addf %18, %19 : vector<128x128xf32>
    %c0_10 = arith.constant 0 : index
    %c0_11 = arith.constant 0 : index
    %21 = vector.load %arg5[%c0_10, %c0_11] : memref<128x128xf32, #tpu.memory_space<vmem>>, vector<128x128xf32>
    tpu.vector_store %arg5[%c0_10, %c0_11], %20 {strides = array<i32>} : memref<128x128xf32, #tpu.memory_space<vmem>>, vector<128x128xf32>,
    return
  }
  func.func @transform_0(%arg0: i32) -> (i32, i32) {
    %c0_i32 = arith.constant 0 : i32
    %c0_i32_0 = arith.constant 0 : i32
    return %arg0, %c0_i32 : i32, i32
  }
  func.func @transform_1(%arg0: i32) -> (i32, i32) {
    %c0_i32 = arith.constant 0 : i32
    %c0_i32_0 = arith.constant 0 : i32
    %c0_i32_1 = arith.constant 0 : i32
    return %c0_i32, %c0_i32_0 : i32, i32
  }
  func.func @transform_2(%arg0: i32) -> (i32, i32) {
    %c0_i32 = arith.constant 0 : i32
    %c0_i32_0 = arith.constant 0 : i32
    %c0_i32_1 = arith.constant 0 : i32
    return %c0_i32, %c0_i32_0 : i32, i32
  }
  func.func @transform_3(%arg0: i32) -> (i32, i32) {
    %c0_i32 = arith.constant 0 : i32
    %c0_i32_0 = arith.constant 0 : i32
    %c0_i32_1 = arith.constant 0 : i32
    return %c0_i32, %c0_i32_0 : i32, i32
  }
  func.func @transform_4(%arg0: i32) -> (i32, i32) {
    %c0_i32 = arith.constant 0 : i32
    %c0_i32_0 = arith.constant 0 : i32
    return %arg0, %c0_i32 : i32, i32
  }
}

</mosaic_0001>

<llo_original>
// kernel: shortcut_forward.3
$region0: #{shortcut_forward.3}
  #allocation0 [shape = 'u32[]', space=smem, size = 0x4, offset = 0x4, fixed_abs, tag = 'smem constant byte address 0x4 - core index']
  #allocation1 [shape = 'u32[144,128]{1,0:T(1,128)}', space=vmem, size = 0x12000, scoped, tag = 'internal scratch']
  %s0 = inlined_call_operand.vmem [shape: f32[128,128], index: 0, kind: input, shape index: {}, may-alias: {0,4}]
  %s1 = inlined_call_operand.vmem [shape: f32[8,128], index: 1, kind: input, shape index: {}]
  %s2 = inlined_call_operand.vmem [shape: f32[1,128], index: 2, kind: input, shape index: {}]
  %s3 = inlined_call_operand.vmem [shape: f32[1,128], index: 3, kind: input, shape index: {}]
  %s4 = inlined_call_operand.vmem [shape: f32[128,128], index: 4, kind: output, shape index: {}, may-alias: {0,4}]
  %s5 = sld [smem:[#allocation0]]
  $region26: #{shortcut_forward.3} parent=0
    _
  %s7 = ssub.s32 1, %s5
  %s8 = scalar_select 0, %s7, %s5
  // Predicated region
  $region2: #{shortcut_forward.3} parent=0 // pred_check
    _
  $region3: #{shortcut_forward.3} parent=0 // pred_check_branch
    %10 = sbr.rel (0) target = $region5
  $region4: #{shortcut_forward.3} parent=0 // pred_region
    _
  $region5: #{shortcut_forward.3} parent=0 // pred_fallthru
    _
  // Predicated region
  $region6: #{shortcut_forward.3} parent=0 // pred_check
    _
  $region7: #{shortcut_forward.3} parent=0 // pred_check_branch
    %12 = sbr.rel (0) target = $region9
  $region8: #{shortcut_forward.3} parent=0 // pred_region
    _
  $region9: #{shortcut_forward.3} parent=0 // pred_fallthru
    _
  // Predicated region
  $region10: #{shortcut_forward.3} parent=0 // pred_check
    _
  $region11: #{shortcut_forward.3} parent=0 // pred_check_branch
    %14 = sbr.rel (0) target = $region13
  $region12: #{shortcut_forward.3} parent=0 // pred_region
    _
  $region13: #{shortcut_forward.3} parent=0 // pred_fallthru
    _
  // Predicated region
  $region14: #{shortcut_forward.3} parent=0 // pred_check
    _
  $region15: #{shortcut_forward.3} parent=0 // pred_check_branch
    %16 = sbr.rel (0) target = $region17
  $region16: #{shortcut_forward.3} parent=0 // pred_region
    _
  $region17: #{shortcut_forward.3} parent=0 // pred_fallthru
    _
  %v17 = vld [vmem:[%s1] sm:$0x1]
  %v18 = vmul.f32 %v17, 0.0078125
  %v19 = vld [vmem:[%s1 + $0x1] sm:$0x1]
  %v20 = vmul.f32 %v19, 0.0078125
  %v21 = vmul.f32 %v18, %v18
  %v22 = vsub.f32 %v20, %v21
  %v23 = vadd.f32 %v22, 1e-05
  %v24 = vrsqrt.pop %v23
  %v25 = vld [vmem:[%s2] sm:$0x1]
  %v26 = vmul.f32 %v25, %v24
  %v27 = vld [vmem:[%s3] sm:$0x1]
  %v28 = vmul.f32 %v18, %v26
  %v29 = vsub.f32 %v27, %v28
  %v30 = vld [vmem:[%s0] sm:$0xff]
  %v31 = vld [vmem:[%s0 + $0x8] sm:$0xff]
  %v32 = vld [vmem:[%s0 + $0x10] sm:$0xff]
  %v33 = vld [vmem:[%s0 + $0x18] sm:$0xff]
  %v34 = vld [vmem:[%s0 + $0x20] sm:$0xff]
  %v35 = vld [vmem:[%s0 + $0x28] sm:$0xff]
  %v36 = vld [vmem:[%s0 + $0x30] sm:$0xff]
  %v37 = vld [vmem:[%s0 + $0x38] sm:$0xff]
  %v38 = vld [vmem:[%s0 + $0x40] sm:$0xff]
  %v39 = vld [vmem:[%s0 + $0x48] sm:$0xff]
  %v40 = vld [vmem:[%s0 + $0x50] sm:$0xff]
  %v41 = vld [vmem:[%s0 + $0x58] sm:$0xff]
  %v42 = vld [vmem:[%s0 + $0x60] sm:$0xff]
  %v43 = vld [vmem:[%s0 + $0x68] sm:$0xff]
  %v44 = vld [vmem:[%s0 + $0x70] sm:$0xff]
  %v45 = vld [vmem:[%s0 + $0x78] sm:$0xff]
  %v47 = vlaneseq
  %v48 = vshrl.u32 %v47, 7
  %v49 = vsub.s32 0, %v48
  %v50 = vrot.slane %v26, %v49
  %v52 = vmul.f32 %v30, %v50
  %v53 = vmul.f32 %v31, %v50
  %v54 = vmul.f32 %v32, %v50
  %v55 = vmul.f32 %v33, %v50
  %v56 = vmul.f32 %v34, %v50
  %v57 = vmul.f32 %v35, %v50
  %v58 = vmul.f32 %v36, %v50
  %v59 = vmul.f32 %v37, %v50
  %v60 = vmul.f32 %v38, %v50
  %v61 = vmul.f32 %v39, %v50
  %v62 = vmul.f32 %v40, %v50
  %v63 = vmul.f32 %v41, %v50
  %v64 = vmul.f32 %v42, %v50
  %v65 = vmul.f32 %v43, %v50
  %v66 = vmul.f32 %v44, %v50
  %v67 = vmul.f32 %v45, %v50
  %v69 = vlaneseq
  %v70 = vshrl.u32 %v69, 7
  %v71 = vsub.s32 0, %v70
  %v72 = vrot.slane %v29, %v71
  %v74 = vadd.f32 %v52, %v72
  %v75 = vadd.f32 %v53, %v72
  %v76 = vadd.f32 %v54, %v72
  %v77 = vadd.f32 %v55, %v72
  %v78 = vadd.f32 %v56, %v72
  %v79 = vadd.f32 %v57, %v72
  %v80 = vadd.f32 %v58, %v72
  %v81 = vadd.f32 %v59, %v72
  %v82 = vadd.f32 %v60, %v72
  %v83 = vadd.f32 %v61, %v72
  %v84 = vadd.f32 %v62, %v72
  %v85 = vadd.f32 %v63, %v72
  %v86 = vadd.f32 %v64, %v72
  %v87 = vadd.f32 %v65, %v72
  %v88 = vadd.f32 %v66, %v72
  %v89 = vadd.f32 %v67, %v72
  %90 = vst [vmem:[%s4] sm:$0xff] %v74
  %91 = vst [vmem:[%s4 + $0x8] sm:$0xff] %v75
  %92 = vst [vmem:[%s4 + $0x10] sm:$0xff] %v76
  %93 = vst [vmem:[%s4 + $0x18] sm:$0xff] %v77
  %94 = vst [vmem:[%s4 + $0x20] sm:$0xff] %v78
  %95 = vst [vmem:[%s4 + $0x28] sm:$0xff] %v79
  %96 = vst [vmem:[%s4 + $0x30] sm:$0xff] %v80
  %97 = vst [vmem:[%s4 + $0x38] sm:$0xff] %v81
  %98 = vst [vmem:[%s4 + $0x40] sm:$0xff] %v82
  %99 = vst [vmem:[%s4 + $0x48] sm:$0xff] %v83
  %100 = vst [vmem:[%s4 + $0x50] sm:$0xff] %v84
  %101 = vst [vmem:[%s4 + $0x58] sm:$0xff] %v85
  %102 = vst [vmem:[%s4 + $0x60] sm:$0xff] %v86
  %103 = vst [vmem:[%s4 + $0x68] sm:$0xff] %v87
  %104 = vst [vmem:[%s4 + $0x70] sm:$0xff] %v88
  %105 = vst [vmem:[%s4 + $0x78] sm:$0xff] %v89
  // Predicated region
  $region18: #{shortcut_forward.3} parent=0 // pred_check
    _
  $region19: #{shortcut_forward.3} parent=0 // pred_check_branch
    %107 = sbr.rel (0) target = $region21
  $region20: #{shortcut_forward.3} parent=0 // pred_region
    _
  $region21: #{shortcut_forward.3} parent=0 // pred_fallthru
    _
  // Predicated region
  $region22: #{shortcut_forward.3} parent=0 // pred_check
    _
  $region23: #{shortcut_forward.3} parent=0 // pred_check_branch
    %109 = sbr.rel (0) target = $region25
  $region24: #{shortcut_forward.3} parent=0 // pred_region
    _
  $region25: #{shortcut_forward.3} parent=0 // pred_fallthru
    _

// kernel: shortcut_forward.2
$region0: #{shortcut_forward.2}
  #allocation0 [shape = 'u32[]', space=smem, size = 0x4, offset = 0x4, fixed_abs, tag = 'smem constant byte address 0x4 - core index']
  #allocation1 [shape = 'u32[144,128]{1,0:T(1,128)}', space=vmem, size = 0x12000, scoped, tag = 'internal scratch']
  %s0 = inlined_call_operand.vmem [shape: f32[128,128], index: 0, kind: input, shape index: {}]
  %s1 = inlined_call_operand.vmem [shape: f32[128,128], index: 1, kind: input, shape index: {}]
  %s2 = inlined_call_operand.vmem [shape: f32[128,128], index: 2, kind: output, shape index: {0}]
  %s3 = inlined_call_operand.vmem [shape: f32[8,128], index: 3, kind: output, shape index: {1}]
  %4 = xla_tuple %s2, %s3
  %s5 = sld [smem:[#allocation0]]
  $region30: #{shortcut_forward.2} parent=0
    _
  %s7 = ssub.s32 1, %s5
  %s8 = scalar_select 0, %s7, %s5
  // Predicated region
  $region2: #{shortcut_forward.2} parent=0 // pred_check
    _
  $region3: #{shortcut_forward.2} parent=0 // pred_check_branch
    %10 = sbr.rel (0) target = $region5
  $region4: #{shortcut_forward.2} parent=0 // pred_region
    _
  $region5: #{shortcut_forward.2} parent=0 // pred_fallthru
    _
  // Predicated region
  $region6: #{shortcut_forward.2} parent=0 // pred_check
    _
  $region7: #{shortcut_forward.2} parent=0 // pred_check_branch
    %12 = sbr.rel (0) target = $region9
  $region8: #{shortcut_forward.2} parent=0 // pred_region
    _
  $region9: #{shortcut_forward.2} parent=0 // pred_fallthru
    _
  %p13 = scmp.eq.s32.totalorder 0, 0
  // Predicated region
  $region10: #{shortcut_forward.2} parent=0 // pred_check
    %p14 = pneg %p13
  $region11: #{shortcut_forward.2} parent=0 // pred_check_branch
    %16 = sbr.rel (%p14) target = $region13
  $region12: #{shortcut_forward.2} parent=0 // pred_region
    %17 = vst [vmem:[%s3] sm:$0xff] 0.0
  $region13: #{shortcut_forward.2} parent=0 // pred_fallthru
    _
  %v18 = vld [vmem:[%s0] sm:$0xff]
  %v19 = vld [vmem:[%s0 + $0x8] sm:$0xff]
  %v20 = vld [vmem:[%s0 + $0x10] sm:$0xff]
  %v21 = vld [vmem:[%s0 + $0x18] sm:$0xff]
  %v22 = vld [vmem:[%s0 + $0x20] sm:$0xff]
  %v23 = vld [vmem:[%s0 + $0x28] sm:$0xff]
  %v24 = vld [vmem:[%s0 + $0x30] sm:$0xff]
  %v25 = vld [vmem:[%s0 + $0x38] sm:$0xff]
  %v26 = vld [vmem:[%s0 + $0x40] sm:$0xff]
  %v27 = vld [vmem:[%s0 + $0x48] sm:$0xff]
  %v28 = vld [vmem:[%s0 + $0x50] sm:$0xff]
  %v29 = vld [vmem:[%s0 + $0x58] sm:$0xff]
  %v30 = vld [vmem:[%s0 + $0x60] sm:$0xff]
  %v31 = vld [vmem:[%s0 + $0x68] sm:$0xff]
  %v32 = vld [vmem:[%s0 + $0x70] sm:$0xff]
  %v33 = vld [vmem:[%s0 + $0x78] sm:$0xff]
  %v34 = vld [vmem:[%s1] sm:$0xff]
  %v35 = vld [vmem:[%s1 + $0x8] sm:$0xff]
  %v36 = vld [vmem:[%s1 + $0x10] sm:$0xff]
  %v37 = vld [vmem:[%s1 + $0x18] sm:$0xff]
  %v38 = vld [vmem:[%s1 + $0x20] sm:$0xff]
  %v39 = vld [vmem:[%s1 + $0x28] sm:$0xff]
  %v40 = vld [vmem:[%s1 + $0x30] sm:$0xff]
  %v41 = vld [vmem:[%s1 + $0x38] sm:$0xff]
  %v42 = vld [vmem:[%s1 + $0x40] sm:$0xff]
  %v43 = vld [vmem:[%s1 + $0x48] sm:$0xff]
  %v44 = vld [vmem:[%s1 + $0x50] sm:$0xff]
  %v45 = vld [vmem:[%s1 + $0x58] sm:$0xff]
  %v46 = vld [vmem:[%s1 + $0x60] sm:$0xff]
  %v47 = vld [vmem:[%s1 + $0x68] sm:$0xff]
  %v48 = vld [vmem:[%s1 + $0x70] sm:$0xff]
  %v49 = vld [vmem:[%s1 + $0x78] sm:$0xff]
  %50 = vmatprep.subr.mxu0 0.0
  %51 = vmatpush1.msra.mxu0 %v49
  %52 = vmatprep.subr.mxu0 0.0
  %53 = vmatpush1.msra.mxu0 %v48
  %54 = vmatprep.subr.mxu0 0.0
  %55 = vmatpush1.msra.mxu0 %v47
  %56 = vmatprep.subr.mxu0 0.0
  %57 = vmatpush1.msra.mxu0 %v46
  %58 = vmatprep.subr.mxu0 0.0
  %59 = vmatpush1.msra.mxu0 %v45
  %60 = vmatprep.subr.mxu0 0.0
  %61 = vmatpush1.msra.mxu0 %v44
  %62 = vmatprep.subr.mxu0 0.0
  %63 = vmatpush1.msra.mxu0 %v43
  %64 = vmatprep.subr.mxu0 0.0
  %65 = vmatpush1.msra.mxu0 %v42
  %66 = vmatprep.subr.mxu0 0.0
  %67 = vmatpush1.msra.mxu0 %v41
  %68 = vmatprep.subr.mxu0 0.0
  %69 = vmatpush1.msra.mxu0 %v40
  %70 = vmatprep.subr.mxu0 0.0
  %71 = vmatpush1.msra.mxu0 %v39
  %72 = vmatprep.subr.mxu0 0.0
  %73 = vmatpush1.msra.mxu0 %v38
  %74 = vmatprep.subr.mxu0 0.0
  %75 = vmatpush1.msra.mxu0 %v37
  %76 = vmatprep.subr.mxu0 0.0
  %77 = vmatpush1.msra.mxu0 %v36
  %78 = vmatprep.subr.mxu0 0.0
  %79 = vmatpush1.msra.mxu0 %v35
  %80 = vmatprep.subr.mxu0 0.0
  %81 = vmatpush1.msra.mxu0 %v34
  %82 = vmatprep.subr.mxu0 0.0
  %83 = vmatpush2.msra.mxu0 0.0
  %84 = vmatprep.subr.mxu0 0.0
  %85 = vmatpush2.msra.mxu0 0.0
  %86 = vmatprep.subr.mxu0 0.0
  %87 = vmatpush2.msra.mxu0 0.0
  %88 = vmatprep.subr.mxu0 0.0
  %89 = vmatpush2.msra.mxu0 0.0
  %90 = vmatprep.subr.mxu0 0.0
  %91 = vmatpush2.msra.mxu0 0.0
  %92 = vmatprep.subr.mxu0 0.0
  %93 = vmatpush2.msra.mxu0 0.0
  %94 = vmatprep.subr.mxu0 0.0
  %95 = vmatpush2.msra.mxu0 0.0
  %96 = vmatprep.subr.mxu0 0.0
  %97 = vmatpush2.msra.mxu0 0.0
  %98 = vmatprep.subr.mxu0 0.0
  %99 = vmatpush2.msra.mxu0 0.0
  %100 = vmatprep.subr.mxu0 0.0
  %101 = vmatpush2.msra.mxu0 0.0
  %102 = vmatprep.subr.mxu0 0.0
  %103 = vmatpush2.msra.mxu0 0.0
  %104 = vmatprep.subr.mxu0 0.0
  %105 = vmatpush2.msra.mxu0 0.0
  %106 = vmatprep.subr.mxu0 0.0
  %107 = vmatpush2.msra.mxu0 0.0
  %108 = vmatprep.subr.mxu0 0.0
  %109 = vmatpush2.msra.mxu0 0.0
  %110 = vmatprep.subr.mxu0 0.0
  %111 = vmatpush2.msra.mxu0 0.0
  %112 = vmatprep.subr.mxu0 0.0
  %113 = vmatpush2.msra.mxu0 0.0
  %114 = vmatprep.mubr.f32.mxu0 0.0
  %115 = vmatmul.mubr.f32.gmra.mxu0 %v18
  %v116 = vpop.f32.mrf.mxu0
  %v117 = vadd.f32 0.0, %v116
  %v118 = vpop.f32.mrf.mxu0
  %119 = vmatprep.mubr.f32.mxu0 0.0
  %120 = vmatmul.mubr.f32.gmra.mxu0 %v19
  %v121 = vpop.f32.mrf.mxu0
  %v122 = vadd.f32 0.0, %v121
  %v123 = vpop.f32.mrf.mxu0
  %124 = vmatprep.mubr.f32.mxu0 0.0
  %125 = vmatmul.mubr.f32.gmra.mxu0 %v20
  %v126 = vpop.f32.mrf.mxu0
  %v127 = vadd.f32 0.0, %v126
  %v128 = vpop.f32.mrf.mxu0
  %129 = vmatprep.mubr.f32.mxu0 0.0
  %130 = vmatmul.mubr.f32.gmra.mxu0 %v21
  %v131 = vpop.f32.mrf.mxu0
  %v132 = vadd.f32 0.0, %v131
  %v133 = vpop.f32.mrf.mxu0
  %134 = vmatprep.mubr.f32.mxu0 0.0
  %135 = vmatmul.mubr.f32.gmra.mxu0 %v22
  %v136 = vpop.f32.mrf.mxu0
  %v137 = vadd.f32 0.0, %v136
  %v138 = vpop.f32.mrf.mxu0
  %139 = vmatprep.mubr.f32.mxu0 0.0
  %140 = vmatmul.mubr.f32.gmra.mxu0 %v23
  %v141 = vpop.f32.mrf.mxu0
  %v142 = vadd.f32 0.0, %v141
  %v143 = vpop.f32.mrf.mxu0
  %144 = vmatprep.mubr.f32.mxu0 0.0
  %145 = vmatmul.mubr.f32.gmra.mxu0 %v24
  %v146 = vpop.f32.mrf.mxu0
  %v147 = vadd.f32 0.0, %v146
  %v148 = vpop.f32.mrf.mxu0
  %149 = vmatprep.mubr.f32.mxu0 0.0
  %150 = vmatmul.mubr.f32.gmra.mxu0 %v25
  %v151 = vpop.f32.mrf.mxu0
  %v152 = vadd.f32 0.0, %v151
  %v153 = vpop.f32.mrf.mxu0
  %154 = vmatprep.mubr.f32.mxu0 0.0
  %155 = vmatmul.mubr.f32.gmra.mxu0 %v26
  %v156 = vpop.f32.mrf.mxu0
  %v157 = vadd.f32 0.0, %v156
  %v158 = vpop.f32.mrf.mxu0
  %159 = vmatprep.mubr.f32.mxu0 0.0
  %160 = vmatmul.mubr.f32.gmra.mxu0 %v27
  %v161 = vpop.f32.mrf.mxu0
  %v162 = vadd.f32 0.0, %v161
  %v163 = vpop.f32.mrf.mxu0
  %164 = vmatprep.mubr.f32.mxu0 0.0
  %165 = vmatmul.mubr.f32.gmra.mxu0 %v28
  %v166 = vpop.f32.mrf.mxu0
  %v167 = vadd.f32 0.0, %v166
  %v168 = vpop.f32.mrf.mxu0
  %169 = vmatprep.mubr.f32.mxu0 0.0
  %170 = vmatmul.mubr.f32.gmra.mxu0 %v29
  %v171 = vpop.f32.mrf.mxu0
  %v172 = vadd.f32 0.0, %v171
  %v173 = vpop.f32.mrf.mxu0
  %174 = vmatprep.mubr.f32.mxu0 0.0
  %175 = vmatmul.mubr.f32.gmra.mxu0 %v30
  %v176 = vpop.f32.mrf.mxu0
  %v177 = vadd.f32 0.0, %v176
  %v178 = vpop.f32.mrf.mxu0
  %179 = vmatprep.mubr.f32.mxu0 0.0
  %180 = vmatmul.mubr.f32.gmra.mxu0 %v31
  %v181 = vpop.f32.mrf.mxu0
  %v182 = vadd.f32 0.0, %v181
  %v183 = vpop.f32.mrf.mxu0
  %184 = vmatprep.mubr.f32.mxu0 0.0
  %185 = vmatmul.mubr.f32.gmra.mxu0 %v32
  %v186 = vpop.f32.mrf.mxu0
  %v187 = vadd.f32 0.0, %v186
  %v188 = vpop.f32.mrf.mxu0
  %189 = vmatprep.mubr.f32.mxu0 0.0
  %190 = vmatmul.mubr.f32.gmra.mxu0 %v33
  %v191 = vpop.f32.mrf.mxu0
  %v192 = vadd.f32 0.0, %v191
  %v193 = vpop.f32.mrf.mxu0
  %194 = vdwg.mxu0
  %195 = vst [vmem:[%s2] sm:$0xff] %v117
  %196 = vst [vmem:[%s2 + $0x8] sm:$0xff] %v122
  %197 = vst [vmem:[%s2 + $0x10] sm:$0xff] %v127
  %198 = vst [vmem:[%s2 + $0x18] sm:$0xff] %v132
  %199 = vst [vmem:[%s2 + $0x20] sm:$0xff] %v137
  %200 = vst [vmem:[%s2 + $0x28] sm:$0xff] %v142
  %201 = vst [vmem:[%s2 + $0x30] sm:$0xff] %v147
  %202 = vst [vmem:[%s2 + $0x38] sm:$0xff] %v152
  %203 = vst [vmem:[%s2 + $0x40] sm:$0xff] %v157
  %204 = vst [vmem:[%s2 + $0x48] sm:$0xff] %v162
  %205 = vst [vmem:[%s2 + $0x50] sm:$0xff] %v167
  %206 = vst [vmem:[%s2 + $0x58] sm:$0xff] %v172
  %207 = vst [vmem:[%s2 + $0x60] sm:$0xff] %v177
  %208 = vst [vmem:[%s2 + $0x68] sm:$0xff] %v182
  %209 = vst [vmem:[%s2 + $0x70] sm:$0xff] %v187
  %210 = vst [vmem:[%s2 + $0x78] sm:$0xff] %v192
  %v211 = vld [vmem:[%s3] sm:$0x1]
  %v212 = vadd.f32 %v117, %v122
  %v213 = vadd.f32 %v212, %v127
  %v214 = vadd.f32 %v213, %v132
  %v215 = vadd.f32 %v214, %v137
  %v216 = vadd.f32 %v215, %v142
  %v217 = vadd.f32 %v216, %v147
  %v218 = vadd.f32 %v217, %v152
  %v219 = vadd.f32 %v218, %v157
  %v220 = vadd.f32 %v219, %v162
  %v221 = vadd.f32 %v220, %v167
  %v222 = vadd.f32 %v221, %v172
  %v223 = vadd.f32 %v222, %v177
  %v224 = vadd.f32 %v223, %v182
  %v225 = vadd.f32 %v224, %v187
  %v226 = vadd.f32 %v225, %v192
  %v227 = vrot.slane %v226, 4
  %v228 = vadd.f32 %v226, %v227
  %v229 = vrot.slane %v228, 2
  %v230 = vadd.f32 %v228, %v229
  %v231 = vrot.slane %v230, 1
  %v232 = vadd.f32 %v230, %v231
  %v233 = vadd.f32 %v211, %v232
  %234 = vst [vmem:[%s3] sm:$0x1] %v233
  %v235 = vld [vmem:[%s3 + $0x1] sm:$0x1]
  %v236 = vmul.f32 %v117, %v117
  %v237 = vmul.f32 %v122, %v122
  %v238 = vmul.f32 %v127, %v127
  %v239 = vmul.f32 %v132, %v132
  %v240 = vmul.f32 %v137, %v137
  %v241 = vmul.f32 %v142, %v142
  %v242 = vmul.f32 %v147, %v147
  %v243 = vmul.f32 %v152, %v152
  %v244 = vmul.f32 %v157, %v157
  %v245 = vmul.f32 %v162, %v162
  %v246 = vmul.f32 %v167, %v167
  %v247 = vmul.f32 %v172, %v172
  %v248 = vmul.f32 %v177, %v177
  %v249 = vmul.f32 %v182, %v182
  %v250 = vmul.f32 %v187, %v187
  %v251 = vmul.f32 %v192, %v192
  %v252 = vadd.f32 %v236, %v237
  %v253 = vadd.f32 %v252, %v238
  %v254 = vadd.f32 %v253, %v239
  %v255 = vadd.f32 %v254, %v240
  %v256 = vadd.f32 %v255, %v241
  %v257 = vadd.f32 %v256, %v242
  %v258 = vadd.f32 %v257, %v243
  %v259 = vadd.f32 %v258, %v244
  %v260 = vadd.f32 %v259, %v245
  %v261 = vadd.f32 %v260, %v246
  %v262 = vadd.f32 %v261, %v247
  %v263 = vadd.f32 %v262, %v248
  %v264 = vadd.f32 %v263, %v249
  %v265 = vadd.f32 %v264, %v250
  %v266 = vadd.f32 %v265, %v251
  %v267 = vrot.slane %v266, 4
  %v268 = vadd.f32 %v266, %v267
  %v269 = vrot.slane %v268, 2
  %v270 = vadd.f32 %v268, %v269
  %v271 = vrot.slane %v270, 1
  %v272 = vadd.f32 %v270, %v271
  %v273 = vadd.f32 %v235, %v272
  %274 = vst [vmem:[%s3 + $0x1] sm:$0x1] %v273
  // Predicated region
  $region14: #{shortcut_forward.2} parent=0 // pred_check
    _
  $region15: #{shortcut_forward.2} parent=0 // pred_check_branch
    %276 = sbr.rel (0) target = $region17
  $region16: #{shortcut_forward.2} parent=0 // pred_region
    _
  $region17: #{shortcut_forward.2} parent=0 // pred_fallthru
    _
  // Predicated region
  $region18: #{shortcut_forward.2} parent=0 // pred_check
    _
  $region19: #{shortcut_forward.2} parent=0 // pred_check_branch
    %278 = sbr.rel (0) target = $region21
  $region20: #{shortcut_forward.2} parent=0 // pred_region
    _
  $region21: #{shortcut_forward.2} parent=0 // pred_fallthru
    _
  // Predicated region
  $region22: #{shortcut_forward.2} parent=0 // pred_check
    _
  $region23: #{shortcut_forward.2} parent=0 // pred_check_branch
    %280 = sbr.rel (0) target = $region25
  $region24: #{shortcut_forward.2} parent=0 // pred_region
    _
  $region25: #{shortcut_forward.2} parent=0 // pred_fallthru
    _
  // Predicated region
  $region26: #{shortcut_forward.2} parent=0 // pred_check
    _
  $region27: #{shortcut_forward.2} parent=0 // pred_check_branch
    %282 = sbr.rel (0) target = $region29
  $region28: #{shortcut_forward.2} parent=0 // pred_region
    _
  $region29: #{shortcut_forward.2} parent=0 // pred_fallthru
    _

</llo_original>
